<compile_context>
chip_gen: v7x
topology: tpu7x:2x2x1
jax: 0.10.0
libtpu: 0.0.40
codegen_flags: <defaults>
</compile_context>

<pallas_src>
import functools

import jax
import jax.numpy as jnp
from jax.experimental import pallas as pl
from jax.experimental.pallas import tpu as pltpu


# ---------------------------------------------------------------------------
# helpers
# ---------------------------------------------------------------------------
def _round_up(x, m):
    return ((x + m - 1) // m) * m


def _tpu_vmem_capacity_bytes():
    """Physical VMEM of the local chip; conservative 64 MiB fallback (v7x)."""
    try:
        info = pltpu.get_tpu_info()
        cap = getattr(info, "vmem_capacity_bytes", None)
        if cap:
            return int(cap)
    except Exception:
        pass
    return 64 << 20


def _pad2(a, rows, cols):
    r, c = a.shape
    if (r, c) == (rows, cols):
        return a
    return jnp.pad(a, ((0, rows - r), (0, cols - c)))


def _seq_tile_candidates(s_pad):
    """128-multiple divisors of s_pad, descending."""
    cands = [t for t in range(128, s_pad + 1, 128) if s_pad % t == 0]
    return sorted(cands, reverse=True) or [s_pad]


# ---------------------------------------------------------------------------
# kernel 1: Q/K/V projection pre-pass over flattened (rows, E) input
# ---------------------------------------------------------------------------
def _qkv_proj_kernel(x_ref, wq_ref, bq_ref, wk_ref, bk_ref, wv_ref, bv_ref,
                     q_ref, k_ref, v_ref, *, compute_dtype, scale):
    x = x_ref[...].astype(compute_dtype)
    q = jnp.dot(x, wq_ref[...], preferred_element_type=jnp.float32) + bq_ref[...]
    # fold 1/sqrt(n_embed) into Q here (L elems/row) instead of the SxS scores
    q_ref[...] = (q * scale).astype(q_ref.dtype)
    k = jnp.dot(x, wk_ref[...], preferred_element_type=jnp.float32) + bk_ref[...]
    k_ref[...] = k.astype(k_ref.dtype)
    v = jnp.dot(x, wv_ref[...], preferred_element_type=jnp.float32) + bv_ref[...]
    v_ref[...] = v.astype(v_ref.dtype)


def _project_qkv(x_flat, wq, bq, wk, bk, wv, bv, *, compute_dtype, scale, vmem_cap):
    n, e = x_flat.shape
    l_pad = wq.shape[1]

    # rows per grid step: big enough to amortize per-step overhead
    tr = 512 if n >= 512 else _round_up(n, 8)
    n_pad = _round_up(n, tr)
    if n_pad != n:
        x_flat = jnp.pad(x_flat, ((0, n_pad - n), (0, 0)))

    cdt = jnp.dtype(compute_dtype).itemsize
    est = (2 * (tr * e * 4 + 3 * tr * l_pad * cdt)          # dbl-buffered IO blocks
           + 2 * 3 * (e * l_pad * cdt + l_pad * 4)          # resident weights/biases
           + tr * e * 4 + 4 * tr * l_pad * 4)               # live temporaries
    vmem_limit = int(min(max(2 * est, 4 << 20), int(0.8 * vmem_cap)))

    def inv(shape):
        return pl.BlockSpec(shape, lambda r: (0, 0))

    kernel = functools.partial(_qkv_proj_kernel,
                               compute_dtype=compute_dtype, scale=scale)
    q, k, v = pl.pallas_call(
        kernel,
        out_shape=tuple(jax.ShapeDtypeStruct((n_pad, l_pad), compute_dtype)
                        for _ in range(3)),
        grid_spec=pltpu.PrefetchScalarGridSpec(
            num_scalar_prefetch=0,
            grid=(n_pad // tr,),
            in_specs=[
                pl.BlockSpec((tr, e), lambda r: (r, 0)),
                inv((e, l_pad)), inv((1, l_pad)),
                inv((e, l_pad)), inv((1, l_pad)),
                inv((e, l_pad)), inv((1, l_pad)),
            ],
            out_specs=[pl.BlockSpec((tr, l_pad), lambda r: (r, 0))
                       for _ in range(3)],
        ),
        compiler_params=pltpu.CompilerParams(
            dimension_semantics=("parallel",),
            vmem_limit_bytes=vmem_limit),
    )(x_flat, wq, bq, wk, bk, wv, bv)
    return q[:n], k[:n], v[:n]


# ---------------------------------------------------------------------------
# kernel 2: tiled tanh-attention + fused output projection
# ---------------------------------------------------------------------------
def _attention_kernel(q_ref, k_ref, v_ref, wo_ref, bo_ref,
                      attw_ref, out_ref, acc_scr, *, compute_dtype, tanh_dtype):
    ki = pl.program_id(2)
    nk = pl.num_programs(2)

    @pl.when(ki == 0)
    def _():
        acc_scr[...] = jnp.zeros_like(acc_scr)

    # scores: batched contraction over the (padded) latent dim, no explicit k.T.
    scores = jnp.einsum("bqd,bkd->bqk", q_ref[...], k_ref[...],
                        preferred_element_type=jnp.float32)       # (Bt,Tq,Tk) f32

    attw = jnp.tanh(scores.astype(tanh_dtype))                    # bf16 EUP on v6e/v7x
    attw_pv = attw.astype(compute_dtype)
    # store the *same* values that feed the PV matmul -> attw / output consistent
    attw_ref[...] = attw_pv.astype(attw_ref.dtype)

    acc_scr[...] += jnp.einsum("bqk,bkd->bqd", attw_pv, v_ref[...],
                               preferred_element_type=jnp.float32)

    @pl.when(ki == nk - 1)
    def _():
        bt, tq, lp = acc_scr.shape
        att = acc_scr[...].reshape(bt * tq, lp).astype(compute_dtype)
        out = jnp.dot(att, wo_ref[...],
                      preferred_element_type=jnp.float32) + bo_ref[...]
        out_ref[...] = out.reshape(bt, tq, -1).astype(out_ref.dtype)


# ---------------------------------------------------------------------------
# wrapper
# ---------------------------------------------------------------------------
def biattention(x, wq, bq, wk, bk, wv, bv, wo, bo, *,
                compute_dtype=jnp.bfloat16,
                attw_dtype=jnp.float32,
                tanh_dtype=None,
                rows_target=None, seq_tile_target=None):
    """x: (B,S,E); weights (in,out); biases (1,out). Returns (att_weights, output).

    compute_dtype: MXU operand dtype (bf16 recommended, f32 for exactness).
    attw_dtype:    dtype of returned att_weights (bf16 halves the O(S^2) writeback).
    tanh_dtype:    dtype tanh is evaluated in (default compute_dtype; pass f32 on v5e).
    """
    B, S, E = x.shape
    L = wq.shape[1]
    Eo = wo.shape[1]
    if tanh_dtype is None:
        tanh_dtype = compute_dtype

    vmem_cap = _tpu_vmem_capacity_bytes()
    big_vmem = vmem_cap >= (96 << 20)          # v5e / v6e (128 MiB) vs v7x (64 MiB)
    if seq_tile_target is None:
        seq_tile_target = 512 if big_vmem else 256
    if rows_target is None:
        rows_target = 512 if big_vmem else 256

    # ---- latent dim padded to a full 128-lane MXU contraction depth (exact: zeros)
    L_pad = max(_round_up(L, 128), 128)
    wq_p = _pad2(wq, E, L_pad).astype(compute_dtype)
    wk_p = _pad2(wk, E, L_pad).astype(compute_dtype)
    wv_p = _pad2(wv, E, L_pad).astype(compute_dtype)
    bq_p = _pad2(bq, 1, L_pad).astype(jnp.float32)
    bk_p = _pad2(bk, 1, L_pad).astype(jnp.float32)
    bv_p = _pad2(bv, 1, L_pad).astype(jnp.float32)
    wo_p = _pad2(wo, L_pad, Eo).astype(compute_dtype)
    bo_p = bo.astype(jnp.float32)

    # ---- sequence handling: lane-dense 128-multiple tiles, pad S if needed
    if S % 128 == 0 or S <= 128:
        S_pad = S                      # full-extent block is legal for small S
    else:
        S_pad = _round_up(S, 128)

    if S_pad % 128 == 0:
        cands = _seq_tile_candidates(S_pad)
        Tq = max(t for t in cands if t <= max(seq_tile_target, 128))
        Tk = Tq
    else:
        cands = [S_pad]
        Tq = Tk = S_pad

    # batch tile: largest divisor of B keeping Bt*Tq near the row target
    Bt = 1
    for c in range(1, B + 1):
        if B % c == 0 and c * Tq <= max(rows_target, Tq):
            Bt = c

    cdt = jnp.dtype(compute_dtype).itemsize
    awt = jnp.dtype(attw_dtype).itemsize

    def attn_vmem(bt, tq, tk):
        io = 2 * (bt * tq * L_pad * cdt + 2 * bt * tk * L_pad * cdt
                  + bt * tq * tk * awt + bt * tq * Eo * 4)       # dbl-buffered IO
        wts = 2 * (L_pad * Eo * cdt + Eo * 4)                    # resident Wo/bo
        scr = bt * tq * L_pad * 4                                # f32 accumulator
        tmp = 2 * bt * tq * tk * 4 + bt * tq * L_pad * 4 + bt * tq * Eo * 4
        return io + wts + scr + tmp

    # shrink tiles until the footprint fits the chip's VMEM with headroom
    budget = int(0.4 * vmem_cap)
    while attn_vmem(Bt, Tq, Tk) > budget:
        smaller_k = [t for t in cands if t < Tk]
        smaller_q = [t for t in cands if t < Tq]
        if smaller_k:
            Tk = max(smaller_k)
        elif Bt > 1:
            Bt = max(c for c in range(1, Bt) if B % c == 0)
        elif smaller_q:
            Tq = max(smaller_q)
        else:
            break

    nb, nq, nk = B // Bt, S_pad // Tq, S_pad // Tk

    # keep the parallel grid extent >= 2 so both v7x TensorCores get work
    if nb * nq < 2:
        smaller_q = [t for t in cands if t < Tq]
        if smaller_q:
            Tq = max(smaller_q)
        elif Bt > 1:
            Bt = max(c for c in range(1, Bt) if B % c == 0)
        nb, nq = B // Bt, S_pad // Tq

    vmem_limit = int(min(max(2 * attn_vmem(Bt, Tq, Tk), 4 << 20),
                         int(0.85 * vmem_cap)))

    # ---- projection pre-pass: Q/K/V computed exactly once for all rows
    scale = 1.0 / (E ** 0.5)
    q2, k2, v2 = _project_qkv(x.reshape(B * S, E), wq_p, bq_p, wk_p, bk_p,
                              wv_p, bv_p, compute_dtype=compute_dtype,
                              scale=scale, vmem_cap=vmem_cap)
    q3 = q2.reshape(B, S, L_pad)
    k3 = k2.reshape(B, S, L_pad)
    v3 = v2.reshape(B, S, L_pad)
    if S_pad != S:
        # zero-padded K rows give tanh(0)=0 and zero-padded V rows contribute 0
        # to the PV accumulation, so no masking is needed in the kernel.
        pad = ((0, 0), (0, S_pad - S), (0, 0))
        q3, k3, v3 = (jnp.pad(a, pad) for a in (q3, k3, v3))

    kernel = functools.partial(_attention_kernel,
                               compute_dtype=compute_dtype, tanh_dtype=tanh_dtype)

    # TODO(synk): for very long S, cache the whole-sequence projected K/V for a
    # batch tile in VMEM scratch via memory_space=pl.ANY + manual DMA (option b)
    # to avoid re-reading K/V blocks for every query tile; and on v7x mark the
    # invariant Wo/bo BlockSpecs pipeline_mode=pl.Buffered(1) to single-buffer.
    grid_spec = pltpu.PrefetchScalarGridSpec(
        num_scalar_prefetch=0,
        grid=(nb, nq, nk),
        in_specs=[
            pl.BlockSpec((Bt, Tq, L_pad), lambda b, qi, ki: (b, qi, 0)),   # Q
            pl.BlockSpec((Bt, Tk, L_pad), lambda b, qi, ki: (b, ki, 0)),   # K
            pl.BlockSpec((Bt, Tk, L_pad), lambda b, qi, ki: (b, ki, 0)),   # V
            pl.BlockSpec((L_pad, Eo), lambda b, qi, ki: (0, 0)),           # Wo
            pl.BlockSpec((1, Eo), lambda b, qi, ki: (0, 0)),               # bo
        ],
        out_specs=[
            pl.BlockSpec((Bt, Tq, Tk), lambda b, qi, ki: (b, qi, ki)),     # att_weights
            pl.BlockSpec((Bt, Tq, Eo), lambda b, qi, ki: (b, qi, 0)),      # output (resident over ki)
        ],
        scratch_shapes=[pltpu.VMEM((Bt, Tq, L_pad), jnp.float32)],         # f32 PV accumulator
    )

    attw_full, out_full = pl.pallas_call(
        kernel,
        out_shape=(
            jax.ShapeDtypeStruct((B, S_pad, S_pad), attw_dtype),
            jax.ShapeDtypeStruct((B, S_pad, Eo), jnp.float32),
        ),
        grid_spec=grid_spec,
        compiler_params=pltpu.CompilerParams(
            dimension_semantics=("parallel", "parallel", "arbitrary"),
            vmem_limit_bytes=vmem_limit),
    )(q3, k3, v3, wo_p, bo_p)

    if S_pad != S:
        attw_full = attw_full[:, :S, :S]
        out_full = out_full[:, :S, :]
    return attw_full, out_full


# ---------------------------------------------------------------------------
# pure-JAX reference (matches BiAttention.forward)
# ---------------------------------------------------------------------------
def _reference(x, wq, bq, wk, bk, wv, bv, wo, bo):
    q = x @ wq + bq
    k = x @ wk + bk
    v = x @ wv + bv
    scores = jnp.einsum("bqd,bkd->bqk", q, k) / (x.shape[-1] ** 0.5)
    attw = jnp.tanh(scores)
    att_out = jnp.einsum("bqk,bkd->bqd", attw, v)
    out = att_out @ wo + bo
    return attw, out


if __name__ == "__main__":
    key = jax.random.PRNGKey(0)

    def make_params(k, E, L, Eo, scale=0.05):
        kq, kbq, kk, kbk, kv, kbv, ko, kbo = jax.random.split(k, 8)
        return (scale * jax.random.normal(kq, (E, L), jnp.float32),
                scale * jax.random.normal(kbq, (1, L), jnp.float32),
                scale * jax.random.normal(kk, (E, L), jnp.float32),
                scale * jax.random.normal(kbk, (1, L), jnp.float32),
                scale * jax.random.normal(kv, (E, L), jnp.float32),
                scale * jax.random.normal(kbv, (1, L), jnp.float32),
                scale * jax.random.normal(ko, (L, Eo), jnp.float32),
                scale * jax.random.normal(kbo, (1, Eo), jnp.float32))

    # ---- Test A: small shapes from the module (B=2, S=8, E=32, L=16, Eo=32)
    B, S, E, L, Eo = 2, 8, 32, 16, 32
    kx, kp = jax.random.split(key)
    x = jax.random.normal(kx, (B, S, E), jnp.float32)
    params = make_params(kp, E, L, Eo)
    attw_exp, out_exp = _reference(x, *params)

    # A1: exactness with f32 MXU operands
    attw32, out32 = jax.block_until_ready(
        biattention(x, *params, compute_dtype=jnp.float32,
                    tanh_dtype=jnp.float32))
    assert attw32.shape == (B, S, S) and out32.shape == (B, S, Eo)
    assert jnp.allclose(attw32, attw_exp, rtol=1e-4, atol=1e-4)
    assert jnp.allclose(out32, out_exp, rtol=1e-4, atol=1e-4)

    # A2: optimized path (bf16 MXU operands, bf16 tanh, f32 accumulation)
    attw16, out16 = jax.block_until_ready(biattention(x, *params))
    assert jnp.allclose(attw16, attw_exp, rtol=2e-2, atol=2e-2)
    assert jnp.allclose(out16, out_exp, rtol=2e-2, atol=2e-2)

    # ---- Test B: S multiple of 128 -> tiled path with nq = nk = 2
    Sb = 256
    kxb, _ = jax.random.split(kx)
    xb = jax.random.normal(kxb, (B, Sb, E), jnp.float32)
    attw_exp_b, out_exp_b = _reference(xb, *params)
    attw_b, out_b = jax.block_until_ready(
        biattention(xb, *params, seq_tile_target=128, rows_target=128))
    assert attw_b.shape == (B, Sb, Sb) and out_b.shape == (B, Sb, Eo)
    assert jnp.allclose(attw_b, attw_exp_b, rtol=3e-2, atol=3e-2)
    assert jnp.allclose(out_b, out_exp_b, rtol=3e-2, atol=3e-2)

    # ---- Test C: ragged S (padded to 256 internally) + bf16 att_weights output
    Sc = 200
    kxc, _ = jax.random.split(kxb)
    xc = jax.random.normal(kxc, (B, Sc, E), jnp.float32)
    attw_exp_c, out_exp_c = _reference(xc, *params)
    attw_c, out_c = jax.block_until_ready(
        biattention(xc, *params, attw_dtype=jnp.bfloat16,
                    seq_tile_target=128, rows_target=128))
    assert attw_c.shape == (B, Sc, Sc) and out_c.shape == (B, Sc, Eo)
    assert jnp.allclose(attw_c.astype(jnp.float32), attw_exp_c, rtol=3e-2, atol=3e-2)
    assert jnp.allclose(out_c, out_exp_c, rtol=3e-2, atol=3e-2)

    print("KERNEL_OK")
</pallas_src>

<mosaic_0001>
module attributes {stable_mosaic.version = 11 : i64} {
  func.func @_qkv_proj_kernel(%arg0: i32, %arg1: memref<16x32xf32, #tpu.memory_space<vmem>>, %arg2: memref<32x128xf32, #tpu.memory_space<vmem>>, %arg3: memref<1x128xf32, #tpu.memory_space<vmem>>, %arg4: memref<32x128xf32, #tpu.memory_space<vmem>>, %arg5: memref<1x128xf32, #tpu.memory_space<vmem>>, %arg6: memref<32x128xf32, #tpu.memory_space<vmem>>, %arg7: memref<1x128xf32, #tpu.memory_space<vmem>>, %arg8: memref<16x128xf32, #tpu.memory_space<vmem>>, %arg9: memref<16x128xf32, #tpu.memory_space<vmem>>, %arg10: memref<16x128xf32, #tpu.memory_space<vmem>>) attributes {dimension_semantics = [#tpu.dimension_semantics<parallel>], iteration_bounds = array<i64: 1>, scalar_prefetch = 0 : i64, scratch_operands = 0 : i64, tpu.core_type = #tpu.core_type<tc>, window_params = [{transform_indices = @transform_0, window_bounds = array<i64: 16, 32>}, {pipeline_mode = #tpu.pipeline_mode<synchronous>, transform_indices = @transform_1, window_bounds = array<i64: 32, 128>}, {pipeline_mode = #tpu.pipeline_mode<synchronous>, transform_indices = @transform_2, window_bounds = array<i64: 1, 128>}, {pipeline_mode = #tpu.pipeline_mode<synchronous>, transform_indices = @transform_3, window_bounds = array<i64: 32, 128>}, {pipeline_mode = #tpu.pipeline_mode<synchronous>, transform_indices = @transform_4, window_bounds = array<i64: 1, 128>}, {pipeline_mode = #tpu.pipeline_mode<synchronous>, transform_indices = @transform_5, window_bounds = array<i64: 32, 128>}, {pipeline_mode = #tpu.pipeline_mode<synchronous>, transform_indices = @transform_6, window_bounds = array<i64: 1, 128>}, {transform_indices = @transform_7, window_bounds = array<i64: 16, 128>}, {transform_indices = @transform_8, window_bounds = array<i64: 16, 128>}, {transform_indices = @transform_9, window_bounds = array<i64: 16, 128>}]} {
    %c0 = arith.constant 0 : index
    %c0_0 = arith.constant 0 : index
    %0 = vector.load %arg1[%c0, %c0_0] : memref<16x32xf32, #tpu.memory_space<vmem>>, vector<16x32xf32>
    %c0_1 = arith.constant 0 : index
    %c0_2 = arith.constant 0 : index
    %1 = vector.load %arg2[%c0_1, %c0_2] : memref<32x128xf32, #tpu.memory_space<vmem>>, vector<32x128xf32>
    %cst = arith.constant dense<0.000000e+00> : vector<16x128xf32>
    %2 = tpu.matmul %0, %1, %cst {dimension_numbers = #tpu.dot_dimension_numbers<[1], [0], [0], [1], [0, 0, 1, 1], [], []>} : vector<16x32xf32>, vector<32x128xf32>, vector<16x128xf32> -> vector<16x128xf32>
    %c0_3 = arith.constant 0 : index
    %c0_4 = arith.constant 0 : index
    %3 = vector.load %arg3[%c0_3, %c0_4] : memref<1x128xf32, #tpu.memory_space<vmem>>, vector<1x128xf32>
    %4 = vector.broadcast %3 : vector<1x128xf32> to vector<16x128xf32>
    %5 = arith.addf %2, %4 : vector<16x128xf32>
    %cst_5 = arith.constant 0.176776692 : f32
    %6 = vector.broadcast %cst_5 : f32 to vector<16x128xf32>
    %7 = arith.mulf %5, %6 : vector<16x128xf32>
    %c0_6 = arith.constant 0 : index
    %c0_7 = arith.constant 0 : index
    %8 = vector.load %arg8[%c0_6, %c0_7] : memref<16x128xf32, #tpu.memory_space<vmem>>, vector<16x128xf32>
    tpu.vector_store %arg8[%c0_6, %c0_7], %7 {strides = array<i32>} : memref<16x128xf32, #tpu.memory_space<vmem>>, vector<16x128xf32>,
    %c0_8 = arith.constant 0 : index
    %c0_9 = arith.constant 0 : index
    %9 = vector.load %arg4[%c0_8, %c0_9] : memref<32x128xf32, #tpu.memory_space<vmem>>, vector<32x128xf32>
    %cst_10 = arith.constant dense<0.000000e+00> : vector<16x128xf32>
    %10 = tpu.matmul %0, %9, %cst_10 {dimension_numbers = #tpu.dot_dimension_numbers<[1], [0], [0], [1], [0, 0, 1, 1], [], []>} : vector<16x32xf32>, vector<32x128xf32>, vector<16x128xf32> -> vector<16x128xf32>
    %c0_11 = arith.constant 0 : index
    %c0_12 = arith.constant 0 : index
    %11 = vector.load %arg5[%c0_11, %c0_12] : memref<1x128xf32, #tpu.memory_space<vmem>>, vector<1x128xf32>
    %12 = vector.broadcast %11 : vector<1x128xf32> to vector<16x128xf32>
    %13 = arith.addf %10, %12 : vector<16x128xf32>
    %c0_13 = arith.constant 0 : index
    %c0_14 = arith.constant 0 : index
    %14 = vector.load %arg9[%c0_13, %c0_14] : memref<16x128xf32, #tpu.memory_space<vmem>>, vector<16x128xf32>
    tpu.vector_store %arg9[%c0_13, %c0_14], %13 {strides = array<i32>} : memref<16x128xf32, #tpu.memory_space<vmem>>, vector<16x128xf32>,
    %c0_15 = arith.constant 0 : index
    %c0_16 = arith.constant 0 : index
    %15 = vector.load %arg6[%c0_15, %c0_16] : memref<32x128xf32, #tpu.memory_space<vmem>>, vector<32x128xf32>
    %cst_17 = arith.constant dense<0.000000e+00> : vector<16x128xf32>
    %16 = tpu.matmul %0, %15, %cst_17 {dimension_numbers = #tpu.dot_dimension_numbers<[1], [0], [0], [1], [0, 0, 1, 1], [], []>} : vector<16x32xf32>, vector<32x128xf32>, vector<16x128xf32> -> vector<16x128xf32>
    %c0_18 = arith.constant 0 : index
    %c0_19 = arith.constant 0 : index
    %17 = vector.load %arg7[%c0_18, %c0_19] : memref<1x128xf32, #tpu.memory_space<vmem>>, vector<1x128xf32>
    %18 = vector.broadcast %17 : vector<1x128xf32> to vector<16x128xf32>
    %19 = arith.addf %16, %18 : vector<16x128xf32>
    %c0_20 = arith.constant 0 : index
    %c0_21 = arith.constant 0 : index
    %20 = vector.load %arg10[%c0_20, %c0_21] : memref<16x128xf32, #tpu.memory_space<vmem>>, vector<16x128xf32>
    tpu.vector_store %arg10[%c0_20, %c0_21], %19 {strides = array<i32>} : memref<16x128xf32, #tpu.memory_space<vmem>>, vector<16x128xf32>,
    return
  }
  func.func @transform_0(%arg0: i32) -> (i32, i32) {
    %c0_i32 = arith.constant 0 : i32
    %c0_i32_0 = arith.constant 0 : i32
    return %arg0, %c0_i32 : i32, i32
  }
  func.func @transform_1(%arg0: i32) -> (i32, i32) {
    %c0_i32 = arith.constant 0 : i32
    %c0_i32_0 = arith.constant 0 : i32
    %c0_i32_1 = arith.constant 0 : i32
    return %c0_i32, %c0_i32_0 : i32, i32
  }
  func.func @transform_2(%arg0: i32) -> (i32, i32) {
    %c0_i32 = arith.constant 0 : i32
    %c0_i32_0 = arith.constant 0 : i32
    %c0_i32_1 = arith.constant 0 : i32
    return %c0_i32, %c0_i32_0 : i32, i32
  }
  func.func @transform_3(%arg0: i32) -> (i32, i32) {
    %c0_i32 = arith.constant 0 : i32
    %c0_i32_0 = arith.constant 0 : i32
    %c0_i32_1 = arith.constant 0 : i32
    return %c0_i32, %c0_i32_0 : i32, i32
  }
  func.func @transform_4(%arg0: i32) -> (i32, i32) {
    %c0_i32 = arith.constant 0 : i32
    %c0_i32_0 = arith.constant 0 : i32
    %c0_i32_1 = arith.constant 0 : i32
    return %c0_i32, %c0_i32_0 : i32, i32
  }
  func.func @transform_5(%arg0: i32) -> (i32, i32) {
    %c0_i32 = arith.constant 0 : i32
    %c0_i32_0 = arith.constant 0 : i32
    %c0_i32_1 = arith.constant 0 : i32
    return %c0_i32, %c0_i32_0 : i32, i32
  }
  func.func @transform_6(%arg0: i32) -> (i32, i32) {
    %c0_i32 = arith.constant 0 : i32
    %c0_i32_0 = arith.constant 0 : i32
    %c0_i32_1 = arith.constant 0 : i32
    return %c0_i32, %c0_i32_0 : i32, i32
  }
  func.func @transform_7(%arg0: i32) -> (i32, i32) {
    %c0_i32 = arith.constant 0 : i32
    %c0_i32_0 = arith.constant 0 : i32
    return %arg0, %c0_i32 : i32, i32
  }
  func.func @transform_8(%arg0: i32) -> (i32, i32) {
    %c0_i32 = arith.constant 0 : i32
    %c0_i32_0 = arith.constant 0 : i32
    return %arg0, %c0_i32 : i32, i32
  }
  func.func @transform_9(%arg0: i32) -> (i32, i32) {
    %c0_i32 = arith.constant 0 : i32
    %c0_i32_0 = arith.constant 0 : i32
    return %arg0, %c0_i32 : i32, i32
  }
}

</mosaic_0001>

<llo_original>
// kernel: tpu_custom_call.1
$region0: #{tpu_custom_call.1}
  #allocation0 [shape = 'u32[]', space=smem, size = 0x4, offset = 0x4, fixed_abs, tag = 'smem constant byte address 0x4 - core index']
  #allocation1 [shape = 'u32[144,128]{1,0:T(1,128)}', space=vmem, size = 0x12000, scoped, tag = 'internal scratch']
  %s0 = inlined_call_operand.hbm [shape: f32[16,32], index: 0, kind: input, shape index: {}]
  %s1 = inlined_call_operand.hbm [shape: f32[32,128], index: 1, kind: input, shape index: {}]
  %s2 = inlined_call_operand.vmem [shape: f32[1,128], index: 2, kind: input, shape index: {}]
  %s3 = inlined_call_operand.hbm [shape: f32[32,128], index: 3, kind: input, shape index: {}]
  %s4 = inlined_call_operand.vmem [shape: f32[1,128], index: 4, kind: input, shape index: {}]
  %s5 = inlined_call_operand.hbm [shape: f32[32,128], index: 5, kind: input, shape index: {}]
  %s6 = inlined_call_operand.vmem [shape: f32[1,128], index: 6, kind: input, shape index: {}]
  %s7 = inlined_call_operand.hbm [shape: f32[16,128], index: 7, kind: output, shape index: {0}]
  %s8 = inlined_call_operand.hbm [shape: f32[16,128], index: 8, kind: output, shape index: {1}]
  %s9 = inlined_call_operand.hbm [shape: f32[16,128], index: 9, kind: output, shape index: {2}]
  %10 = xla_tuple %s7, %s8, %s9
  %s11 = sld [smem:[#allocation0]]
  $region70: #{tpu_custom_call.1} parent=0
    _
  %s13 = ssub.s32 1, %s11
  %s14 = scalar_select 0, %s13, %s11
  $region1: #{tpu_custom_call.1} parent=0
    #allocation2 [shape = 'u8[8192]{0}', space=vmem, size = 0x2000, scoped, tag = 'input window, operand 0, single buffered']
    #allocation3 [shape = 's32[1]{0}', space=sflag, size = 0x4, scoped, tag = 'scoped memory for tpu_custom_call.1']
    #allocation4 [shape = 's32[1]{0}', space=sflag, size = 0x4, scoped, tag = 'scoped memory for tpu_custom_call.1']
    #allocation5 [shape = 'u8[16384]{0}', space=vmem, size = 0x4000, scoped, tag = 'input window, operand 1, single buffered']
    #allocation6 [shape = 's32[1]{0}', space=sflag, size = 0x4, scoped, tag = 'scoped memory for tpu_custom_call.1']
    #allocation7 [shape = 'u8[16384]{0}', space=vmem, size = 0x4000, scoped, tag = 'input window, operand 3, single buffered']
    #allocation8 [shape = 'u8[16384]{0}', space=vmem, size = 0x4000, scoped, tag = 'input window, operand 5, single buffered']
    #allocation9 [shape = 's32[1]{0}', space=sflag, size = 0x4, scoped, tag = 'scoped memory for tpu_custom_call.1']
    #allocation10 [shape = 'u8[8192]{0}', space=vmem, size = 0x2000, scoped, tag = 'output window, operand 0, single buffered']
    #allocation11 [shape = 'u8[8192]{0}', space=vmem, size = 0x2000, scoped, tag = 'output window, operand 1, single buffered']
    #allocation12 [shape = 's32[1]{0}', space=sflag, size = 0x4, scoped, tag = 'scoped memory for tpu_custom_call.1']
    #allocation13 [shape = 'u8[8192]{0}', space=vmem, size = 0x2000, scoped, tag = 'output window, operand 2, single buffered']
    %15 = vsyncpa [#allocation3], 0
    %16 = vsyncpa [#allocation6], 0
    %17 = vsyncpa [#allocation9], 0
    %18 = vsyncpa [#allocation4], 0
    %19 = vsyncpa [#allocation12], 0
    // Predicated region
    $region2: #{tpu_custom_call.1} parent=1 // pred_check
      _
    $region3: #{tpu_custom_call.1} parent=1 // pred_check_branch
      %21 = sbr.rel (0) target = $region5
    $region4: #{tpu_custom_call.1} parent=1 // pred_region
      %s23 = ssub.s32 256, 256
      %24 = vsyncadd [#allocation3], %s23
      %s25 = sshll.u32 [#allocation2], 4
      %s26 = int_to_ptr.vmem [resolvable:$true] %s25
      %31 = dma.hbm_to_vmem [thread:$0]  %s0, 256, %s26, [#allocation3], 128, 128, 8
    $region5: #{tpu_custom_call.1} parent=1 // pred_fallthru
      _
    // Predicated region
    $region6: #{tpu_custom_call.1} parent=1 // pred_check
      _
    $region7: #{tpu_custom_call.1} parent=1 // pred_check_branch
      %33 = sbr.rel (0) target = $region9
    $region8: #{tpu_custom_call.1} parent=1 // pred_region
      %s35 = ssub.s32 512, 512
      %36 = vsyncadd [#allocation6], %s35
      %s37 = sshll.u32 [#allocation5], 4
      %s38 = int_to_ptr.vmem [resolvable:$true] %s37
      %43 = dma.hbm_to_vmem [thread:$0]  %s1, 512, %s38, [#allocation6], 128, 128, 8
    $region9: #{tpu_custom_call.1} parent=1 // pred_fallthru
      _
    // Predicated region
    $region10: #{tpu_custom_call.1} parent=1 // pred_check
      _
    $region11: #{tpu_custom_call.1} parent=1 // pred_check_branch
      %45 = sbr.rel (0) target = $region13
    $region12: #{tpu_custom_call.1} parent=1 // pred_region
      _
    $region13: #{tpu_custom_call.1} parent=1 // pred_fallthru
      _
    // Predicated region
    $region14: #{tpu_custom_call.1} parent=1 // pred_check
      _
    $region15: #{tpu_custom_call.1} parent=1 // pred_check_branch
      %47 = sbr.rel (0) target = $region17
    $region16: #{tpu_custom_call.1} parent=1 // pred_region
      %s49 = ssub.s32 512, 512
      %50 = vsyncadd [#allocation6], %s49
      %s51 = sshll.u32 [#allocation7], 4
      %s52 = int_to_ptr.vmem [resolvable:$true] %s51
      %57 = dma.hbm_to_vmem [thread:$0]  %s3, 512, %s52, [#allocation6], 128, 128, 8
    $region17: #{tpu_custom_call.1} parent=1 // pred_fallthru
      _
    // Predicated region
    $region18: #{tpu_custom_call.1} parent=1 // pred_check
      _
    $region19: #{tpu_custom_call.1} parent=1 // pred_check_branch
      %59 = sbr.rel (0) target = $region21
    $region20: #{tpu_custom_call.1} parent=1 // pred_region
      _
    $region21: #{tpu_custom_call.1} parent=1 // pred_fallthru
      _
    // Predicated region
    $region22: #{tpu_custom_call.1} parent=1 // pred_check
      _
    $region23: #{tpu_custom_call.1} parent=1 // pred_check_branch
      %61 = sbr.rel (0) target = $region25
    $region24: #{tpu_custom_call.1} parent=1 // pred_region
      %s63 = ssub.s32 512, 512
      %64 = vsyncadd [#allocation9], %s63
      %s65 = sshll.u32 [#allocation8], 4
      %s66 = int_to_ptr.vmem [resolvable:$true] %s65
      %71 = dma.hbm_to_vmem [thread:$0]  %s5, 512, %s66, [#allocation9], 128, 128, 8
    $region25: #{tpu_custom_call.1} parent=1 // pred_fallthru
      _
    // Predicated region
    $region26: #{tpu_custom_call.1} parent=1 // pred_check
      _
    $region27: #{tpu_custom_call.1} parent=1 // pred_check_branch
      %73 = sbr.rel (0) target = $region29
    $region28: #{tpu_custom_call.1} parent=1 // pred_region
      _
    $region29: #{tpu_custom_call.1} parent=1 // pred_fallthru
      _
    // Predicated region
    $region30: #{tpu_custom_call.1} parent=1 // pred_check
      _
    $region31: #{tpu_custom_call.1} parent=1 // pred_check_branch
      %75 = sbr.rel (0) target = $region33
    $region32: #{tpu_custom_call.1} parent=1 // pred_region
      %76 = dma.done [#allocation3], 256
    $region33: #{tpu_custom_call.1} parent=1 // pred_fallthru
      _
    // Predicated region
    $region34: #{tpu_custom_call.1} parent=1 // pred_check
      _
    $region35: #{tpu_custom_call.1} parent=1 // pred_check_branch
      %78 = sbr.rel (0) target = $region37
    $region36: #{tpu_custom_call.1} parent=1 // pred_region
      %79 = dma.done [#allocation6], 512
    $region37: #{tpu_custom_call.1} parent=1 // pred_fallthru
      _
    // Predicated region
    $region38: #{tpu_custom_call.1} parent=1 // pred_check
      _
    $region39: #{tpu_custom_call.1} parent=1 // pred_check_branch
      %81 = sbr.rel (0) target = $region41
    $region40: #{tpu_custom_call.1} parent=1 // pred_region
      %82 = dma.done [#allocation6], 512
    $region41: #{tpu_custom_call.1} parent=1 // pred_fallthru
      _
    // Predicated region
    $region42: #{tpu_custom_call.1} parent=1 // pred_check
      _
    $region43: #{tpu_custom_call.1} parent=1 // pred_check_branch
      %84 = sbr.rel (0) target = $region45
    $region44: #{tpu_custom_call.1} parent=1 // pred_region
      %85 = dma.done [#allocation9], 512
    $region45: #{tpu_custom_call.1} parent=1 // pred_fallthru
      _
    %v86 = vld [vmem:[#allocation2] sm:$0xff]
    %v87 = vld [vmem:[#allocation2 + $0x8] sm:$0xff]
    %v88 = vld [vmem:[#allocation5] sm:$0xff]
    %v89 = vld [vmem:[#allocation5 + $0x8] sm:$0xff]
    %v90 = vld [vmem:[#allocation5 + $0x10] sm:$0xff]
    %v91 = vld [vmem:[#allocation5 + $0x18] sm:$0xff]
    %v92 = vld [vmem:[%s2] sm:$0x1]
    %v94 = vlaneseq
    %v95 = vshrl.u32 %v94, 7
    %v96 = vsub.s32 0, %v95
    %v97 = vrot.slane %v92, %v96
    %vm99 = vcmask 261120
    %v101 = vsel %vm99, %v86, 0
    %v104 = vsel %vm99, %v87, 0
    %106 = vmatprep.subr.mxu0 0.0
    %107 = vmatpush1.msra.mxu0 %v88
    %108 = vmatprep.subr.mxu0 0.0
    %109 = vmatpush1.msra.mxu0 %v89
    %110 = vmatprep.subr.mxu0 0.0
    %111 = vmatpush1.msra.mxu0 %v90
    %112 = vmatprep.subr.mxu0 0.0
    %113 = vmatpush1.msra.mxu0 %v91
    %114 = vmatprep.subr.mxu0 0.0
    %115 = vmatpush1.msra.mxu0 0.0
    %116 = vmatprep.subr.mxu0 0.0
    %117 = vmatpush1.msra.mxu0 0.0
    %118 = vmatprep.subr.mxu0 0.0
    %119 = vmatpush1.msra.mxu0 0.0
    %120 = vmatprep.subr.mxu0 0.0
    %121 = vmatpush1.msra.mxu0 0.0
    %122 = vmatprep.subr.mxu0 0.0
    %123 = vmatpush1.msra.mxu0 0.0
    %124 = vmatprep.subr.mxu0 0.0
    %125 = vmatpush1.msra.mxu0 0.0
    %126 = vmatprep.subr.mxu0 0.0
    %127 = vmatpush1.msra.mxu0 0.0
    %128 = vmatprep.subr.mxu0 0.0
    %129 = vmatpush1.msra.mxu0 0.0
    %130 = vmatprep.subr.mxu0 0.0
    %131 = vmatpush1.msra.mxu0 0.0
    %132 = vmatprep.subr.mxu0 0.0
    %133 = vmatpush1.msra.mxu0 0.0
    %134 = vmatprep.subr.mxu0 0.0
    %135 = vmatpush1.msra.mxu0 0.0
    %136 = vmatprep.subr.mxu0 0.0
    %137 = vmatpush1.msra.mxu0 0.0
    %138 = vmatprep.subr.mxu0 0.0
    %139 = vmatpush1.msra.mxu0 0.0
    %140 = vmatprep.subr.mxu0 0.0
    %141 = vmatpush1.msra.mxu0 0.0
    %142 = vmatprep.subr.mxu0 0.0
    %143 = vmatpush1.msra.mxu0 0.0
    %144 = vmatprep.subr.mxu0 0.0
    %145 = vmatpush1.msra.mxu0 0.0
    %146 = vmatprep.subr.mxu0 0.0
    %147 = vmatpush1.msra.mxu0 0.0
    %148 = vmatprep.subr.mxu0 0.0
    %149 = vmatpush1.msra.mxu0 0.0
    %150 = vmatprep.subr.mxu0 0.0
    %151 = vmatpush1.msra.mxu0 0.0
    %152 = vmatprep.subr.mxu0 0.0
    %153 = vmatpush1.msra.mxu0 0.0
    %154 = vmatprep.subr.mxu0 0.0
    %155 = vmatpush1.msra.mxu0 0.0
    %156 = vmatprep.subr.mxu0 0.0
    %157 = vmatpush1.msra.mxu0 0.0
    %158 = vmatprep.subr.mxu0 0.0
    %159 = vmatpush1.msra.mxu0 0.0
    %160 = vmatprep.subr.mxu0 0.0
    %161 = vmatpush1.msra.mxu0 0.0
    %162 = vmatprep.subr.mxu0 0.0
    %163 = vmatpush1.msra.mxu0 0.0
    %164 = vmatprep.subr.mxu0 0.0
    %165 = vmatpush1.msra.mxu0 0.0
    %166 = vmatprep.subr.mxu0 0.0
    %167 = vmatpush1.msra.mxu0 0.0
    %168 = vmatprep.subr.mxu0 0.0
    %169 = vmatpush1.msra.mxu0 0.0
    %170 = vmatprep.mubr.f32.mxu0 0.0
    %171 = vmatmul.mubr.f32.gmra.mrb[0].mxu0 %v101
    %v172 = vpop.f32.mrb[0].mxu0
    %v173 = vadd.f32 %v97, %v172
    %v174 = vpop.f32.mrb[0].mxu0
    %175 = vmatprep.mubr.f32.mxu0 0.0
    %176 = vmatmul.mubr.f32.gmra.mrb[0].mxu0 %v104
    %v177 = vpop.f32.mrb[0].mxu0
    %v178 = vadd.f32 %v97, %v177
    %v179 = vpop.f32.mrb[0].mxu0
    %180 = vdwg.mxu0
    %v181 = vmul.f32 %v173, 0.17677669
    %v182 = vmul.f32 %v178, 0.17677669
    %183 = vst [vmem:[#allocation10] sm:$0xff] %v181
    %184 = vst [vmem:[#allocation10 + $0x8] sm:$0xff] %v182
    %v185 = vld [vmem:[#allocation7] sm:$0xff]
    %v186 = vld [vmem:[#allocation7 + $0x8] sm:$0xff]
    %v187 = vld [vmem:[#allocation7 + $0x10] sm:$0xff]
    %v188 = vld [vmem:[#allocation7 + $0x18] sm:$0xff]
    %v189 = vld [vmem:[%s4] sm:$0x1]
    %v191 = vlaneseq
    %v192 = vshrl.u32 %v191, 7
    %v193 = vsub.s32 0, %v192
    %v194 = vrot.slane %v189, %v193
    %196 = vmatprep.subr.mxu0 0.0
    %197 = vmatpush1.msra.mxu0 %v185
    %198 = vmatprep.subr.mxu0 0.0
    %199 = vmatpush1.msra.mxu0 %v186
    %200 = vmatprep.subr.mxu0 0.0
    %201 = vmatpush1.msra.mxu0 %v187
    %202 = vmatprep.subr.mxu0 0.0
    %203 = vmatpush1.msra.mxu0 %v188
    %204 = vmatprep.subr.mxu0 0.0
    %205 = vmatpush1.msra.mxu0 0.0
    %206 = vmatprep.subr.mxu0 0.0
    %207 = vmatpush1.msra.mxu0 0.0
    %208 = vmatprep.subr.mxu0 0.0
    %209 = vmatpush1.msra.mxu0 0.0
    %210 = vmatprep.subr.mxu0 0.0
    %211 = vmatpush1.msra.mxu0 0.0
    %212 = vmatprep.subr.mxu0 0.0
    %213 = vmatpush1.msra.mxu0 0.0
    %214 = vmatprep.subr.mxu0 0.0
    %215 = vmatpush1.msra.mxu0 0.0
    %216 = vmatprep.subr.mxu0 0.0
    %217 = vmatpush1.msra.mxu0 0.0
    %218 = vmatprep.subr.mxu0 0.0
    %219 = vmatpush1.msra.mxu0 0.0
    %220 = vmatprep.subr.mxu0 0.0
    %221 = vmatpush1.msra.mxu0 0.0
    %222 = vmatprep.subr.mxu0 0.0
    %223 = vmatpush1.msra.mxu0 0.0
    %224 = vmatprep.subr.mxu0 0.0
    %225 = vmatpush1.msra.mxu0 0.0
    %226 = vmatprep.subr.mxu0 0.0
    %227 = vmatpush1.msra.mxu0 0.0
    %228 = vmatprep.subr.mxu0 0.0
    %229 = vmatpush1.msra.mxu0 0.0
    %230 = vmatprep.subr.mxu0 0.0
    %231 = vmatpush1.msra.mxu0 0.0
    %232 = vmatprep.subr.mxu0 0.0
    %233 = vmatpush1.msra.mxu0 0.0
    %234 = vmatprep.subr.mxu0 0.0
    %235 = vmatpush1.msra.mxu0 0.0
    %236 = vmatprep.subr.mxu0 0.0
    %237 = vmatpush1.msra.mxu0 0.0
    %238 = vmatprep.subr.mxu0 0.0
    %239 = vmatpush1.msra.mxu0 0.0
    %240 = vmatprep.subr.mxu0 0.0
    %241 = vmatpush1.msra.mxu0 0.0
    %242 = vmatprep.subr.mxu0 0.0
    %243 = vmatpush1.msra.mxu0 0.0
    %244 = vmatprep.subr.mxu0 0.0
    %245 = vmatpush1.msra.mxu0 0.0
    %246 = vmatprep.subr.mxu0 0.0
    %247 = vmatpush1.msra.mxu0 0.0
    %248 = vmatprep.subr.mxu0 0.0
    %249 = vmatpush1.msra.mxu0 0.0
    %250 = vmatprep.subr.mxu0 0.0
    %251 = vmatpush1.msra.mxu0 0.0
    %252 = vmatprep.subr.mxu0 0.0
    %253 = vmatpush1.msra.mxu0 0.0
    %254 = vmatprep.subr.mxu0 0.0
    %255 = vmatpush1.msra.mxu0 0.0
    %256 = vmatprep.subr.mxu0 0.0
    %257 = vmatpush1.msra.mxu0 0.0
    %258 = vmatprep.subr.mxu0 0.0
    %259 = vmatpush1.msra.mxu0 0.0
    %260 = vmatprep.mubr.f32.mxu0 0.0
    %261 = vmatmul.mubr.f32.gmra.mrb[0].mxu0 %v101
    %v262 = vpop.f32.mrb[0].mxu0
    %v263 = vadd.f32 %v194, %v262
    %v264 = vpop.f32.mrb[0].mxu0
    %265 = vmatprep.mubr.f32.mxu0 0.0
    %266 = vmatmul.mubr.f32.gmra.mrb[0].mxu0 %v104
    %v267 = vpop.f32.mrb[0].mxu0
    %v268 = vadd.f32 %v194, %v267
    %v269 = vpop.f32.mrb[0].mxu0
    %270 = vdwg.mxu0
    %271 = vst [vmem:[#allocation11] sm:$0xff] %v263
    %272 = vst [vmem:[#allocation11 + $0x8] sm:$0xff] %v268
    %v273 = vld [vmem:[#allocation8] sm:$0xff]
    %v274 = vld [vmem:[#allocation8 + $0x8] sm:$0xff]
    %v275 = vld [vmem:[#allocation8 + $0x10] sm:$0xff]
    %v276 = vld [vmem:[#allocation8 + $0x18] sm:$0xff]
    %v277 = vld [vmem:[%s6] sm:$0x1]
    %v279 = vlaneseq
    %v280 = vshrl.u32 %v279, 7
    %v281 = vsub.s32 0, %v280
    %v282 = vrot.slane %v277, %v281
    %284 = vmatprep.subr.mxu0 0.0
    %285 = vmatpush1.msra.mxu0 %v273
    %286 = vmatprep.subr.mxu0 0.0
    %287 = vmatpush1.msra.mxu0 %v274
    %288 = vmatprep.subr.mxu0 0.0
    %289 = vmatpush1.msra.mxu0 %v275
    %290 = vmatprep.subr.mxu0 0.0
    %291 = vmatpush1.msra.mxu0 %v276
    %292 = vmatprep.subr.mxu0 0.0
    %293 = vmatpush1.msra.mxu0 0.0
    %294 = vmatprep.subr.mxu0 0.0
    %295 = vmatpush1.msra.mxu0 0.0
    %296 = vmatprep.subr.mxu0 0.0
    %297 = vmatpush1.msra.mxu0 0.0
    %298 = vmatprep.subr.mxu0 0.0
    %299 = vmatpush1.msra.mxu0 0.0
    %300 = vmatprep.subr.mxu0 0.0
    %301 = vmatpush1.msra.mxu0 0.0
    %302 = vmatprep.subr.mxu0 0.0
    %303 = vmatpush1.msra.mxu0 0.0
    %304 = vmatprep.subr.mxu0 0.0
    %305 = vmatpush1.msra.mxu0 0.0
    %306 = vmatprep.subr.mxu0 0.0
    %307 = vmatpush1.msra.mxu0 0.0
    %308 = vmatprep.subr.mxu0 0.0
    %309 = vmatpush1.msra.mxu0 0.0
    %310 = vmatprep.subr.mxu0 0.0
    %311 = vmatpush1.msra.mxu0 0.0
    %312 = vmatprep.subr.mxu0 0.0
    %313 = vmatpush1.msra.mxu0 0.0
    %314 = vmatprep.subr.mxu0 0.0
    %315 = vmatpush1.msra.mxu0 0.0
    %316 = vmatprep.subr.mxu0 0.0
    %317 = vmatpush1.msra.mxu0 0.0
    %318 = vmatprep.subr.mxu0 0.0
    %319 = vmatpush1.msra.mxu0 0.0
    %320 = vmatprep.subr.mxu0 0.0
    %321 = vmatpush1.msra.mxu0 0.0
    %322 = vmatprep.subr.mxu0 0.0
    %323 = vmatpush1.msra.mxu0 0.0
    %324 = vmatprep.subr.mxu0 0.0
    %325 = vmatpush1.msra.mxu0 0.0
    %326 = vmatprep.subr.mxu0 0.0
    %327 = vmatpush1.msra.mxu0 0.0
    %328 = vmatprep.subr.mxu0 0.0
    %329 = vmatpush1.msra.mxu0 0.0
    %330 = vmatprep.subr.mxu0 0.0
    %331 = vmatpush1.msra.mxu0 0.0
    %332 = vmatprep.subr.mxu0 0.0
    %333 = vmatpush1.msra.mxu0 0.0
    %334 = vmatprep.subr.mxu0 0.0
    %335 = vmatpush1.msra.mxu0 0.0
    %336 = vmatprep.subr.mxu0 0.0
    %337 = vmatpush1.msra.mxu0 0.0
    %338 = vmatprep.subr.mxu0 0.0
    %339 = vmatpush1.msra.mxu0 0.0
    %340 = vmatprep.subr.mxu0 0.0
    %341 = vmatpush1.msra.mxu0 0.0
    %342 = vmatprep.subr.mxu0 0.0
    %343 = vmatpush1.msra.mxu0 0.0
    %344 = vmatprep.subr.mxu0 0.0
    %345 = vmatpush1.msra.mxu0 0.0
    %346 = vmatprep.subr.mxu0 0.0
    %347 = vmatpush1.msra.mxu0 0.0
    %348 = vmatprep.mubr.f32.mxu0 0.0
    %349 = vmatmul.mubr.f32.gmra.mrb[0].mxu0 %v101
    %v350 = vpop.f32.mrb[0].mxu0
    %v351 = vadd.f32 %v282, %v350
    %v352 = vpop.f32.mrb[0].mxu0
    %353 = vmatprep.mubr.f32.mxu0 0.0
    %354 = vmatmul.mubr.f32.gmra.mrb[0].mxu0 %v104
    %v355 = vpop.f32.mrb[0].mxu0
    %v356 = vadd.f32 %v282, %v355
    %v357 = vpop.f32.mrb[0].mxu0
    %358 = vdwg.mxu0
    %359 = vst [vmem:[#allocation13] sm:$0xff] %v351
    %360 = vst [vmem:[#allocation13 + $0x8] sm:$0xff] %v356
    // Predicated region
    $region46: #{tpu_custom_call.1} parent=1 // pred_check
      _
    $region47: #{tpu_custom_call.1} parent=1 // pred_check_branch
      %362 = sbr.rel (0) target = $region49
    $region48: #{tpu_custom_call.1} parent=1 // pred_region
      %s364 = ssub.s32 256, 256
      %365 = vsyncadd [#allocation4], %s364
      %s366 = sshll.u32 [#allocation10], 4
      %s367 = int_to_ptr.vmem [resolvable:$true] %s366
      %372 = dma.vmem_to_hbm [thread:$0]  %s367, 256, %s7, [#allocation4], 128, 128, 8
    $region49: #{tpu_custom_call.1} parent=1 // pred_fallthru
      _
    // Predicated region
    $region50: #{tpu_custom_call.1} parent=1 // pred_check
      _
    $region51: #{tpu_custom_call.1} parent=1 // pred_check_branch
      %374 = sbr.rel (0) target = $region53
    $region52: #{tpu_custom_call.1} parent=1 // pred_region
      %s376 = ssub.s32 256, 256
      %377 = vsyncadd [#allocation12], %s376
      %s378 = sshll.u32 [#allocation11], 4
      %s379 = int_to_ptr.vmem [resolvable:$true] %s378
      %384 = dma.vmem_to_hbm [thread:$0]  %s379, 256, %s8, [#allocation12], 128, 128, 8
    $region53: #{tpu_custom_call.1} parent=1 // pred_fallthru
      _
    // Predicated region
    $region54: #{tpu_custom_call.1} parent=1 // pred_check
      _
    $region55: #{tpu_custom_call.1} parent=1 // pred_check_branch
      %386 = sbr.rel (0) target = $region57
    $region56: #{tpu_custom_call.1} parent=1 // pred_region
      %s388 = ssub.s32 256, 256
      %389 = vsyncadd [#allocation12], %s388
      %s390 = sshll.u32 [#allocation13], 4
      %s391 = int_to_ptr.vmem [resolvable:$true] %s390
      %396 = dma.vmem_to_hbm [thread:$0]  %s391, 256, %s9, [#allocation12], 128, 128, 8
    $region57: #{tpu_custom_call.1} parent=1 // pred_fallthru
      _
    // Predicated region
    $region58: #{tpu_custom_call.1} parent=1 // pred_check
      _
    $region59: #{tpu_custom_call.1} parent=1 // pred_check_branch
      %398 = sbr.rel (0) target = $region61
    $region60: #{tpu_custom_call.1} parent=1 // pred_region
      %399 = dma.done [#allocation4], 256
    $region61: #{tpu_custom_call.1} parent=1 // pred_fallthru
      _
    // Predicated region
    $region62: #{tpu_custom_call.1} parent=1 // pred_check
      _
    $region63: #{tpu_custom_call.1} parent=1 // pred_check_branch
      %401 = sbr.rel (0) target = $region65
    $region64: #{tpu_custom_call.1} parent=1 // pred_region
      %402 = dma.done [#allocation12], 256
    $region65: #{tpu_custom_call.1} parent=1 // pred_fallthru
      _
    // Predicated region
    $region66: #{tpu_custom_call.1} parent=1 // pred_check
      _
    $region67: #{tpu_custom_call.1} parent=1 // pred_check_branch
      %404 = sbr.rel (0) target = $region69
    $region68: #{tpu_custom_call.1} parent=1 // pred_region
      %405 = dma.done [#allocation12], 256
    $region69: #{tpu_custom_call.1} parent=1 // pred_fallthru
      _
    %406 = vsyncpa [#allocation3], 1
    %407 = vsyncpa [#allocation6], 1
    %408 = vsyncpa [#allocation9], 1
    %409 = vsyncpa [#allocation4], 1
    %410 = vsyncpa [#allocation12], 1

</llo_original>
